<compile_context>
chip_gen: v6e
topology: v6e:2x2x1
jax: 0.10.0
libtpu: 0.0.40
codegen_flags: <defaults>
</compile_context>

<pallas_src>
import jax
import jax.numpy as jnp
from jax import lax
from jax.experimental import pallas as pl
from jax.experimental.pallas import tpu as pltpu

N_PHM = 1
IN_FEATURES = 1280
UNITS = 131
BN_EPS = 1e-5


def _gsr_kernel(x_ref, w_ref, gb_ref, o_ref):
    """Fused PHMLinear (n=1) + training-mode BatchNorm1d + ReLU, single grid step."""
    # MXU matmul, bf16 operands, f32 accumulation.  (B, K) @ (K, U) -> (B, U)
    h = jnp.dot(x_ref[...].astype(jnp.bfloat16), w_ref[...],
                preferred_element_type=jnp.float32)

    # BatchNorm1d with batch statistics (training mode), biased variance, eps=1e-5.
    # Note: the PHM bias is intentionally NOT added -- a per-feature constant is
    # exactly cancelled by the batch-mean subtraction below.
    m = jnp.mean(h, axis=0, keepdims=True)
    c = h - m
    v = jnp.mean(c * c, axis=0, keepdims=True)

    gamma = gb_ref[0:1, :]
    beta = gb_ref[1:2, :]
    y = gamma * c * lax.rsqrt(v + BN_EPS) + beta

    # ReLU
    o_ref[...] = jnp.maximum(y, 0.0).astype(o_ref.dtype)


@jax.jit
def gsr_ph_base(x2d, w1t_bf16, gb):
    """x2d: (B, 1280) f32, w1t_bf16: (1280, 131) bf16, gb: (2, 131) f32 -> (B, 131) f32."""
    B, K = x2d.shape
    U = w1t_bf16.shape[1]
    return pl.pallas_call(
        _gsr_kernel,
        out_shape=jax.ShapeDtypeStruct((B, U), jnp.float32),
        grid_spec=pltpu.PrefetchScalarGridSpec(
            num_scalar_prefetch=0,
            grid=(1,),
            in_specs=[
                pl.BlockSpec((B, K), lambda i: (0, 0)),   # x (f32, cast to bf16 in-kernel)
                pl.BlockSpec((K, U), lambda i: (0, 0)),   # W1T, bf16, fully resident in VMEM
                pl.BlockSpec((2, U), lambda i: (0, 0)),   # packed [gamma; beta]
            ],
            out_specs=pl.BlockSpec((B, U), lambda i: (0, 0)),
        ),
        compiler_params=pltpu.CompilerParams(
            dimension_semantics=("arbitrary",),
            vmem_limit_bytes=16 * 1024 * 1024,
        ),
    )(x2d, w1t_bf16, gb)


def make_params(key):
    """Deterministic synthetic parameters with shapes implied by the module."""
    n = N_PHM
    out_per = UNITS // n          # 131
    in_per = IN_FEATURES // n     # 1280
    ks = jax.random.split(key, 5)

    # PHMLinear parameters: A (n, n, n), S (n, out//n, in//n), bias (units,)
    A = jax.random.normal(ks[0], (n, n, n), jnp.float32) * 0.5
    S = jax.random.normal(ks[1], (n, out_per, in_per), jnp.float32) * 0.02
    b1 = jax.random.normal(ks[2], (UNITS,), jnp.float32) * 0.01

    # PHM weight = sum_i kron(A[i], S[i]) -> (units, in_features); with n=1 this
    # is just A[0,0,0] * S[0].  Kernel consumes the transpose, stored as bf16.
    W1 = jnp.einsum("ipq,imk->pmqk", A, S).reshape(UNITS, IN_FEATURES)
    W1T_bf16 = W1.T.astype(jnp.bfloat16)          # (1280, 131)

    # BatchNorm1d affine parameters (randomized to exercise the packed path;
    # PyTorch init is gamma=1, beta=0, which is a special case of this).
    gamma = 1.0 + 0.1 * jax.random.normal(ks[3], (UNITS,), jnp.float32)
    beta = 0.1 * jax.random.normal(ks[4], (UNITS,), jnp.float32)
    gb = jnp.stack([gamma, beta], axis=0)         # (2, UNITS)

    return W1T_bf16, gb, b1


def reference(x2d, w1t_bf16, gb, b1):
    """Pure-JAX reference of the PyTorch forward (training-mode BN).

    Uses the same bf16-rounded operands as the kernel.  The bias b1 is kept
    here to demonstrate it is exactly cancelled by the batch-mean subtraction.
    """
    xq = x2d.astype(jnp.bfloat16).astype(jnp.float32)
    wq = w1t_bf16.astype(jnp.float32)
    h = xq @ wq + b1[None, :]
    m = jnp.mean(h, axis=0, keepdims=True)
    v = jnp.mean((h - m) ** 2, axis=0, keepdims=True)
    y = gb[0:1, :] * (h - m) / jnp.sqrt(v + BN_EPS) + gb[1:2, :]
    return jnp.maximum(y, 0.0)


if __name__ == "__main__":
    key = jax.random.PRNGKey(0)
    k_in, k_par = jax.random.split(key)

    # GSR modality input: (batch, 1, 1280).  D1 acts on the last dim and
    # .squeeze(1) drops the singleton channel -> work on (B, 1280) slabs.
    B = 2
    x = jax.random.normal(k_in, (B, 1, IN_FEATURES), jnp.float32)
    x2d = x.reshape(B, IN_FEATURES)

    w1t_bf16, gb, b1 = make_params(k_par)

    out = gsr_ph_base(x2d, w1t_bf16, gb)
    out = jax.block_until_ready(out)

    ref = reference(x2d, w1t_bf16, gb, b1)
    assert out.shape == (B, UNITS)
    assert jnp.allclose(out, ref, rtol=2e-3, atol=2e-3), "mismatch vs reference"

    print("KERNEL_OK")
</pallas_src>

<mosaic_0001>
module attributes {stable_mosaic.version = 11 : i64} {
  func.func @_gsr_kernel(%arg0: i32, %arg1: memref<2x1280xf32, #tpu.memory_space<vmem>>, %arg2: memref<1280x131xbf16, #tpu.memory_space<vmem>>, %arg3: memref<2x131xf32, #tpu.memory_space<vmem>>, %arg4: memref<2x131xf32, #tpu.memory_space<vmem>>) attributes {dimension_semantics = [#tpu.dimension_semantics<arbitrary>], iteration_bounds = array<i64: 1>, scalar_prefetch = 0 : i64, scratch_operands = 0 : i64, tpu.core_type = #tpu.core_type<tc>, window_params = [{pipeline_mode = #tpu.pipeline_mode<synchronous>, transform_indices = @transform_0, window_bounds = array<i64: 2, 1280>}, {pipeline_mode = #tpu.pipeline_mode<synchronous>, transform_indices = @transform_1, window_bounds = array<i64: 1280, 131>}, {pipeline_mode = #tpu.pipeline_mode<synchronous>, transform_indices = @transform_2, window_bounds = array<i64: 2, 131>}, {pipeline_mode = #tpu.pipeline_mode<synchronous>, transform_indices = @transform_3, window_bounds = array<i64: 2, 131>}]} {
    %c0 = arith.constant 0 : index
    %c0_0 = arith.constant 0 : index
    %0 = vector.load %arg1[%c0, %c0_0] : memref<2x1280xf32, #tpu.memory_space<vmem>>, vector<2x1280xf32>
    %1 = arith.truncf %0 : vector<2x1280xf32> to vector<2x1280xbf16>
    %c0_1 = arith.constant 0 : index
    %c0_2 = arith.constant 0 : index
    %2 = vector.load %arg2[%c0_1, %c0_2] : memref<1280x131xbf16, #tpu.memory_space<vmem>>, vector<1280x131xbf16>
    %cst = arith.constant dense<0.000000e+00> : vector<2x131xf32>
    %3 = tpu.matmul %1, %2, %cst {dimension_numbers = #tpu.dot_dimension_numbers<[1], [0], [0], [1], [0, 0, 1, 1], [], []>} : vector<2x1280xbf16>, vector<1280x131xbf16>, vector<2x131xf32> -> vector<2x131xf32>
    %cst_3 = arith.constant dense<0.000000e+00> : vector<131xf32>
    %4 = vector.multi_reduction <add>, %3, %cst_3 [0] : vector<2x131xf32> to vector<131xf32>
    %5 = vector.shape_cast %4 : vector<131xf32> to vector<1x131xf32>
    %cst_4 = arith.constant 2.000000e+00 : f32
    %6 = vector.broadcast %cst_4 : f32 to vector<1x131xf32>
    %7 = arith.divf %5, %6 : vector<1x131xf32>
    %8 = vector.broadcast %7 : vector<1x131xf32> to vector<2x131xf32>
    %9 = arith.subf %3, %8 : vector<2x131xf32>
    %10 = arith.mulf %9, %9 : vector<2x131xf32>
    %cst_5 = arith.constant dense<0.000000e+00> : vector<131xf32>
    %11 = vector.multi_reduction <add>, %10, %cst_5 [0] : vector<2x131xf32> to vector<131xf32>
    %12 = vector.shape_cast %11 : vector<131xf32> to vector<1x131xf32>
    %cst_6 = arith.constant 2.000000e+00 : f32
    %13 = vector.broadcast %cst_6 : f32 to vector<1x131xf32>
    %14 = arith.divf %12, %13 : vector<1x131xf32>
    %c0_7 = arith.constant 0 : index
    %c0_8 = arith.constant 0 : index
    %15 = vector.load %arg3[%c0_7, %c0_8] : memref<2x131xf32, #tpu.memory_space<vmem>>, vector<1x131xf32>
    %c1 = arith.constant 1 : index
    %c0_9 = arith.constant 0 : index
    %16 = vector.load %arg3[%c1, %c0_9] : memref<2x131xf32, #tpu.memory_space<vmem>>, vector<1x131xf32>
    %17 = vector.broadcast %15 : vector<1x131xf32> to vector<2x131xf32>
    %18 = arith.mulf %17, %9 : vector<2x131xf32>
    %cst_10 = arith.constant 9.99999974E-6 : f32
    %19 = vector.broadcast %cst_10 : f32 to vector<1x131xf32>
    %20 = arith.addf %14, %19 : vector<1x131xf32>
    %21 = math.rsqrt %20 : vector<1x131xf32>
    %22 = vector.broadcast %21 : vector<1x131xf32> to vector<2x131xf32>
    %23 = arith.mulf %18, %22 : vector<2x131xf32>
    %24 = vector.broadcast %16 : vector<1x131xf32> to vector<2x131xf32>
    %25 = arith.addf %23, %24 : vector<2x131xf32>
    %cst_11 = arith.constant 0.000000e+00 : f32
    %26 = vector.broadcast %cst_11 : f32 to vector<2x131xf32>
    %27 = arith.maximumf %25, %26 : vector<2x131xf32>
    %c0_12 = arith.constant 0 : index
    %c0_13 = arith.constant 0 : index
    %28 = vector.load %arg4[%c0_12, %c0_13] : memref<2x131xf32, #tpu.memory_space<vmem>>, vector<2x131xf32>
    tpu.vector_store %arg4[%c0_12, %c0_13], %27 {strides = array<i32>} : memref<2x131xf32, #tpu.memory_space<vmem>>, vector<2x131xf32>,
    return
  }
  func.func @transform_0(%arg0: i32) -> (i32, i32) {
    %c0_i32 = arith.constant 0 : i32
    %c0_i32_0 = arith.constant 0 : i32
    %c0_i32_1 = arith.constant 0 : i32
    return %c0_i32, %c0_i32_0 : i32, i32
  }
  func.func @transform_1(%arg0: i32) -> (i32, i32) {
    %c0_i32 = arith.constant 0 : i32
    %c0_i32_0 = arith.constant 0 : i32
    %c0_i32_1 = arith.constant 0 : i32
    return %c0_i32, %c0_i32_0 : i32, i32
  }
  func.func @transform_2(%arg0: i32) -> (i32, i32) {
    %c0_i32 = arith.constant 0 : i32
    %c0_i32_0 = arith.constant 0 : i32
    %c0_i32_1 = arith.constant 0 : i32
    return %c0_i32, %c0_i32_0 : i32, i32
  }
  func.func @transform_3(%arg0: i32) -> (i32, i32) {
    %c0_i32 = arith.constant 0 : i32
    %c0_i32_0 = arith.constant 0 : i32
    %c0_i32_1 = arith.constant 0 : i32
    return %c0_i32, %c0_i32_0 : i32, i32
  }
}

</mosaic_0001>

<llo_original>
// kernel: gsr_ph_base.1
$region0: #{gsr_ph_base.1}
  #allocation0 [shape = 'u32[]', space=smem, size = 0x4, offset = 0x4, fixed_abs, tag = 'smem constant byte address 0x4 - core index']
  #allocation1 [shape = 'u32[144,128]{1,0:T(1,128)}', space=vmem, size = 0x12000, scoped, tag = 'internal scratch']
  %s0 = inlined_call_operand.vmem [shape: f32[2,1280], index: 0, kind: input, shape index: {}]
  %s1 = inlined_call_operand.vmem [shape: bf16[1280,131], index: 1, kind: input, shape index: {}]
  %s2 = inlined_call_operand.vmem [shape: f32[2,131], index: 2, kind: input, shape index: {}]
  %s3 = inlined_call_operand.hbm [shape: f32[2,131], index: 3, kind: output, shape index: {}]
  %s4 = sld [smem:[#allocation0]]
  $region22: #{gsr_ph_base.1} parent=0
    _
  %s6 = ssub.s32 1, %s4
  %s7 = scalar_select 0, %s6, %s4
  $region1: #{gsr_ph_base.1} parent=0
    #allocation2 [shape = 'u8[2048]{0}', space=vmem, size = 0x800, scoped, tag = 'output window, operand 0, single buffered']
    #allocation3 [shape = 's32[1]{0}', space=sflag, size = 0x4, scoped, tag = 'scoped memory for gsr_ph_base.1']
    %8 = vsyncpa [#allocation3], 0
    // Predicated region
    $region2: #{gsr_ph_base.1} parent=1 // pred_check
      _
    $region3: #{gsr_ph_base.1} parent=1 // pred_check_branch
      %10 = sbr.rel (0) target = $region5
    $region4: #{gsr_ph_base.1} parent=1 // pred_region
      _
    $region5: #{gsr_ph_base.1} parent=1 // pred_fallthru
      _
    // Predicated region
    $region6: #{gsr_ph_base.1} parent=1 // pred_check
      _
    $region7: #{gsr_ph_base.1} parent=1 // pred_check_branch
      %12 = sbr.rel (0) target = $region9
    $region8: #{gsr_ph_base.1} parent=1 // pred_region
      _
    $region9: #{gsr_ph_base.1} parent=1 // pred_fallthru
      _
    // Predicated region
    $region10: #{gsr_ph_base.1} parent=1 // pred_check
      _
    $region11: #{gsr_ph_base.1} parent=1 // pred_check_branch
      %14 = sbr.rel (0) target = $region13
    $region12: #{gsr_ph_base.1} parent=1 // pred_region
      _
    $region13: #{gsr_ph_base.1} parent=1 // pred_fallthru
      _
    %v15 = vld [vmem:[%s0] sm:$0xff]
    %v16 = vld [vmem:[%s0 + $0x8] sm:$0xff]
    %v17 = vld [vmem:[%s0 + $0x10] sm:$0xf]
    %v21 = vcombine.high %v15, %v15
    %v23 = vunpack.c.l.s4 1983009808
    %v24 = vunpack.c.0.s8 %v23
    %v25 = vlaneseq
    %v26 = vshrl.u32 %v25, 7
    %v27 = vsub.s32 %v24, %v26
    %v28 = vrot.slane %v15, %v27
    %v30 = vunpack.c.l.s4 1983009808
    %v31 = vunpack.c.0.s8 %v30
    %v32 = vlaneseq
    %v33 = vshrl.u32 %v32, 7
    %v34 = vsub.s32 %v31, %v33
    %v35 = vrot.slane %v21, %v34
    %v36 = vcombine.high %v28, %v28
    %v37 = vcombine.high %v35, %v35
    %v38 = vcombine.high %v16, %v16
    %v40 = vunpack.c.l.s4 1983009808
    %v41 = vunpack.c.0.s8 %v40
    %v42 = vlaneseq
    %v43 = vshrl.u32 %v42, 7
    %v44 = vsub.s32 %v41, %v43
    %v45 = vrot.slane %v16, %v44
    %v47 = vunpack.c.l.s4 1983009808
    %v48 = vunpack.c.0.s8 %v47
    %v49 = vlaneseq
    %v50 = vshrl.u32 %v49, 7
    %v51 = vsub.s32 %v48, %v50
    %v52 = vrot.slane %v38, %v51
    %v53 = vcombine.high %v45, %v45
    %v54 = vcombine.high %v52, %v52
    %v56 = vunpack.c.l.s4 1983009808
    %v57 = vunpack.c.0.s8 %v56
    %v58 = vlaneseq
    %v59 = vshrl.u32 %v58, 7
    %v60 = vsub.s32 %v57, %v59
    %v61 = vrot.slane %v17, %v60
    %v62 = vcombine.high %v61, %v61
    %v73 = vpack.c.bf16 %v28, %v28
    %v74 = vpack.c.bf16 %v36, %v36
    %v75 = vpack.c.bf16 %v35, %v35
    %v76 = vpack.c.bf16 %v37, %v37
    %v77 = vpack.c.bf16 %v45, %v45
    %v78 = vpack.c.bf16 %v53, %v53
    %v79 = vpack.c.bf16 %v52, %v52
    %v80 = vpack.c.bf16 %v54, %v54
    %v81 = vpack.c.bf16 %v61, %v61
    %v82 = vpack.c.bf16 %v62, %v62
    %v83 = vld [vmem:[%s1] sm:$0xff]
    %v84 = vld [vmem:[%s1 + $0x8] sm:$0xff]
    %v85 = vld [vmem:[%s1 + $0x10] sm:$0xff]
    %v86 = vld [vmem:[%s1 + $0x18] sm:$0xff]
    %v87 = vld [vmem:[%s1 + $0x20] sm:$0xff]
    %v88 = vld [vmem:[%s1 + $0x28] sm:$0xff]
    %v89 = vld [vmem:[%s1 + $0x30] sm:$0xff]
    %v90 = vld [vmem:[%s1 + $0x38] sm:$0xff]
    %v91 = vld [vmem:[%s1 + $0x40] sm:$0xff]
    %v92 = vld [vmem:[%s1 + $0x48] sm:$0xff]
    %v93 = vld [vmem:[%s1 + $0x50] sm:$0xff]
    %v94 = vld [vmem:[%s1 + $0x58] sm:$0xff]
    %v95 = vld [vmem:[%s1 + $0x60] sm:$0xff]
    %v96 = vld [vmem:[%s1 + $0x68] sm:$0xff]
    %v97 = vld [vmem:[%s1 + $0x70] sm:$0xff]
    %v98 = vld [vmem:[%s1 + $0x78] sm:$0xff]
    %v99 = vld [vmem:[%s1 + $0x80] sm:$0xff]
    %v100 = vld [vmem:[%s1 + $0x88] sm:$0xff]
    %v101 = vld [vmem:[%s1 + $0x90] sm:$0xff]
    %v102 = vld [vmem:[%s1 + $0x98] sm:$0xff]
    %v103 = vld [vmem:[%s1 + $0xa0] sm:$0xff]
    %v104 = vld [vmem:[%s1 + $0xa8] sm:$0xff]
    %v105 = vld [vmem:[%s1 + $0xb0] sm:$0xff]
    %v106 = vld [vmem:[%s1 + $0xb8] sm:$0xff]
    %v107 = vld [vmem:[%s1 + $0xc0] sm:$0xff]
    %v108 = vld [vmem:[%s1 + $0xc8] sm:$0xff]
    %v109 = vld [vmem:[%s1 + $0xd0] sm:$0xff]
    %v110 = vld [vmem:[%s1 + $0xd8] sm:$0xff]
    %v111 = vld [vmem:[%s1 + $0xe0] sm:$0xff]
    %v112 = vld [vmem:[%s1 + $0xe8] sm:$0xff]
    %v113 = vld [vmem:[%s1 + $0xf0] sm:$0xff]
    %v114 = vld [vmem:[%s1 + $0xf8] sm:$0xff]
    %v115 = vld [vmem:[%s1 + $0x100] sm:$0xff]
    %v116 = vld [vmem:[%s1 + $0x108] sm:$0xff]
    %v117 = vld [vmem:[%s1 + $0x110] sm:$0xff]
    %v118 = vld [vmem:[%s1 + $0x118] sm:$0xff]
    %v119 = vld [vmem:[%s1 + $0x120] sm:$0xff]
    %v120 = vld [vmem:[%s1 + $0x128] sm:$0xff]
    %v121 = vld [vmem:[%s1 + $0x130] sm:$0xff]
    %v122 = vld [vmem:[%s1 + $0x138] sm:$0xff]
    %v123 = vld [vmem:[%s1 + $0x140] sm:$0xff]
    %v124 = vld [vmem:[%s1 + $0x148] sm:$0xff]
    %v125 = vld [vmem:[%s1 + $0x150] sm:$0xff]
    %v126 = vld [vmem:[%s1 + $0x158] sm:$0xff]
    %v127 = vld [vmem:[%s1 + $0x160] sm:$0xff]
    %v128 = vld [vmem:[%s1 + $0x168] sm:$0xff]
    %v129 = vld [vmem:[%s1 + $0x170] sm:$0xff]
    %v130 = vld [vmem:[%s1 + $0x178] sm:$0xff]
    %v131 = vld [vmem:[%s1 + $0x180] sm:$0xff]
    %v132 = vld [vmem:[%s1 + $0x188] sm:$0xff]
    %v133 = vld [vmem:[%s1 + $0x190] sm:$0xff]
    %v134 = vld [vmem:[%s1 + $0x198] sm:$0xff]
    %v135 = vld [vmem:[%s1 + $0x1a0] sm:$0xff]
    %v136 = vld [vmem:[%s1 + $0x1a8] sm:$0xff]
    %v137 = vld [vmem:[%s1 + $0x1b0] sm:$0xff]
    %v138 = vld [vmem:[%s1 + $0x1b8] sm:$0xff]
    %v139 = vld [vmem:[%s1 + $0x1c0] sm:$0xff]
    %v140 = vld [vmem:[%s1 + $0x1c8] sm:$0xff]
    %v141 = vld [vmem:[%s1 + $0x1d0] sm:$0xff]
    %v142 = vld [vmem:[%s1 + $0x1d8] sm:$0xff]
    %v143 = vld [vmem:[%s1 + $0x1e0] sm:$0xff]
    %v144 = vld [vmem:[%s1 + $0x1e8] sm:$0xff]
    %v145 = vld [vmem:[%s1 + $0x1f0] sm:$0xff]
    %v146 = vld [vmem:[%s1 + $0x1f8] sm:$0xff]
    %v147 = vld [vmem:[%s1 + $0x200] sm:$0xff]
    %v148 = vld [vmem:[%s1 + $0x208] sm:$0xff]
    %v149 = vld [vmem:[%s1 + $0x210] sm:$0xff]
    %v150 = vld [vmem:[%s1 + $0x218] sm:$0xff]
    %v151 = vld [vmem:[%s1 + $0x220] sm:$0xff]
    %v152 = vld [vmem:[%s1 + $0x228] sm:$0xff]
    %v153 = vld [vmem:[%s1 + $0x230] sm:$0xff]
    %v154 = vld [vmem:[%s1 + $0x238] sm:$0xff]
    %v155 = vld [vmem:[%s1 + $0x240] sm:$0xff]
    %v156 = vld [vmem:[%s1 + $0x248] sm:$0xff]
    %v157 = vld [vmem:[%s1 + $0x250] sm:$0xff]
    %v158 = vld [vmem:[%s1 + $0x258] sm:$0xff]
    %v159 = vld [vmem:[%s1 + $0x260] sm:$0xff]
    %v160 = vld [vmem:[%s1 + $0x268] sm:$0xff]
    %v161 = vld [vmem:[%s1 + $0x270] sm:$0xff]
    %v162 = vld [vmem:[%s1 + $0x278] sm:$0xff]
    %v163 = vld [vmem:[%s1 + $0x280] sm:$0xff]
    %v164 = vld [vmem:[%s1 + $0x288] sm:$0xff]
    %v165 = vld [vmem:[%s1 + $0x290] sm:$0xff]
    %v166 = vld [vmem:[%s1 + $0x298] sm:$0xff]
    %v167 = vld [vmem:[%s1 + $0x2a0] sm:$0xff]
    %v168 = vld [vmem:[%s1 + $0x2a8] sm:$0xff]
    %v169 = vld [vmem:[%s1 + $0x2b0] sm:$0xff]
    %v170 = vld [vmem:[%s1 + $0x2b8] sm:$0xff]
    %v171 = vld [vmem:[%s1 + $0x2c0] sm:$0xff]
    %v172 = vld [vmem:[%s1 + $0x2c8] sm:$0xff]
    %v173 = vld [vmem:[%s1 + $0x2d0] sm:$0xff]
    %v174 = vld [vmem:[%s1 + $0x2d8] sm:$0xff]
    %v175 = vld [vmem:[%s1 + $0x2e0] sm:$0xff]
    %v176 = vld [vmem:[%s1 + $0x2e8] sm:$0xff]
    %v177 = vld [vmem:[%s1 + $0x2f0] sm:$0xff]
    %v178 = vld [vmem:[%s1 + $0x2f8] sm:$0xff]
    %v179 = vld [vmem:[%s1 + $0x300] sm:$0xff]
    %v180 = vld [vmem:[%s1 + $0x308] sm:$0xff]
    %v181 = vld [vmem:[%s1 + $0x310] sm:$0xff]
    %v182 = vld [vmem:[%s1 + $0x318] sm:$0xff]
    %v183 = vld [vmem:[%s1 + $0x320] sm:$0xff]
    %v184 = vld [vmem:[%s1 + $0x328] sm:$0xff]
    %v185 = vld [vmem:[%s1 + $0x330] sm:$0xff]
    %v186 = vld [vmem:[%s1 + $0x338] sm:$0xff]
    %v187 = vld [vmem:[%s1 + $0x340] sm:$0xff]
    %v188 = vld [vmem:[%s1 + $0x348] sm:$0xff]
    %v189 = vld [vmem:[%s1 + $0x350] sm:$0xff]
    %v190 = vld [vmem:[%s1 + $0x358] sm:$0xff]
    %v191 = vld [vmem:[%s1 + $0x360] sm:$0xff]
    %v192 = vld [vmem:[%s1 + $0x368] sm:$0xff]
    %v193 = vld [vmem:[%s1 + $0x370] sm:$0xff]
    %v194 = vld [vmem:[%s1 + $0x378] sm:$0xff]
    %v195 = vld [vmem:[%s1 + $0x380] sm:$0xff]
    %v196 = vld [vmem:[%s1 + $0x388] sm:$0xff]
    %v197 = vld [vmem:[%s1 + $0x390] sm:$0xff]
    %v198 = vld [vmem:[%s1 + $0x398] sm:$0xff]
    %v199 = vld [vmem:[%s1 + $0x3a0] sm:$0xff]
    %v200 = vld [vmem:[%s1 + $0x3a8] sm:$0xff]
    %v201 = vld [vmem:[%s1 + $0x3b0] sm:$0xff]
    %v202 = vld [vmem:[%s1 + $0x3b8] sm:$0xff]
    %v203 = vld [vmem:[%s1 + $0x3c0] sm:$0xff]
    %v204 = vld [vmem:[%s1 + $0x3c8] sm:$0xff]
    %v205 = vld [vmem:[%s1 + $0x3d0] sm:$0xff]
    %v206 = vld [vmem:[%s1 + $0x3d8] sm:$0xff]
    %v207 = vld [vmem:[%s1 + $0x3e0] sm:$0xff]
    %v208 = vld [vmem:[%s1 + $0x3e8] sm:$0xff]
    %v209 = vld [vmem:[%s1 + $0x3f0] sm:$0xff]
    %v210 = vld [vmem:[%s1 + $0x3f8] sm:$0xff]
    %v211 = vld [vmem:[%s1 + $0x400] sm:$0xff]
    %v212 = vld [vmem:[%s1 + $0x408] sm:$0xff]
    %v213 = vld [vmem:[%s1 + $0x410] sm:$0xff]
    %v214 = vld [vmem:[%s1 + $0x418] sm:$0xff]
    %v215 = vld [vmem:[%s1 + $0x420] sm:$0xff]
    %v216 = vld [vmem:[%s1 + $0x428] sm:$0xff]
    %v217 = vld [vmem:[%s1 + $0x430] sm:$0xff]
    %v218 = vld [vmem:[%s1 + $0x438] sm:$0xff]
    %v219 = vld [vmem:[%s1 + $0x440] sm:$0xff]
    %v220 = vld [vmem:[%s1 + $0x448] sm:$0xff]
    %v221 = vld [vmem:[%s1 + $0x450] sm:$0xff]
    %v222 = vld [vmem:[%s1 + $0x458] sm:$0xff]
    %v223 = vld [vmem:[%s1 + $0x460] sm:$0xff]
    %v224 = vld [vmem:[%s1 + $0x468] sm:$0xff]
    %v225 = vld [vmem:[%s1 + $0x470] sm:$0xff]
    %v226 = vld [vmem:[%s1 + $0x478] sm:$0xff]
    %v227 = vld [vmem:[%s1 + $0x480] sm:$0xff]
    %v228 = vld [vmem:[%s1 + $0x488] sm:$0xff]
    %v229 = vld [vmem:[%s1 + $0x490] sm:$0xff]
    %v230 = vld [vmem:[%s1 + $0x498] sm:$0xff]
    %v231 = vld [vmem:[%s1 + $0x4a0] sm:$0xff]
    %v232 = vld [vmem:[%s1 + $0x4a8] sm:$0xff]
    %v233 = vld [vmem:[%s1 + $0x4b0] sm:$0xff]
    %v234 = vld [vmem:[%s1 + $0x4b8] sm:$0xff]
    %v235 = vld [vmem:[%s1 + $0x4c0] sm:$0xff]
    %v236 = vld [vmem:[%s1 + $0x4c8] sm:$0xff]
    %v237 = vld [vmem:[%s1 + $0x4d0] sm:$0xff]
    %v238 = vld [vmem:[%s1 + $0x4d8] sm:$0xff]
    %v239 = vld [vmem:[%s1 + $0x4e0] sm:$0xff]
    %v240 = vld [vmem:[%s1 + $0x4e8] sm:$0xff]
    %v241 = vld [vmem:[%s1 + $0x4f0] sm:$0xff]
    %v242 = vld [vmem:[%s1 + $0x4f8] sm:$0xff]
    %v403 = vunpack.c.l.b16 %v83
    %v404 = vunpack.c.h.b16 %v83
    %v405 = vunpack.c.l.b16 %v84
    %v406 = vunpack.c.h.b16 %v84
    %v407 = vunpack.c.l.b16 %v85
    %v408 = vunpack.c.h.b16 %v85
    %v409 = vunpack.c.l.b16 %v86
    %v410 = vunpack.c.h.b16 %v86
    %v411 = vunpack.c.l.b16 %v87
    %v412 = vunpack.c.h.b16 %v87
    %v413 = vunpack.c.l.b16 %v88
    %v414 = vunpack.c.h.b16 %v88
    %v415 = vunpack.c.l.b16 %v89
    %v416 = vunpack.c.h.b16 %v89
    %v417 = vunpack.c.l.b16 %v90
    %v418 = vunpack.c.h.b16 %v90
    %v419 = vunpack.c.l.b16 %v91
    %v420 = vunpack.c.h.b16 %v91
    %v421 = vunpack.c.l.b16 %v92
    %v422 = vunpack.c.h.b16 %v92
    %v423 = vunpack.c.l.b16 %v93
    %v424 = vunpack.c.h.b16 %v93
    %v425 = vunpack.c.l.b16 %v94
    %v426 = vunpack.c.h.b16 %v94
    %v427 = vunpack.c.l.b16 %v95
    %v428 = vunpack.c.h.b16 %v95
    %v429 = vunpack.c.l.b16 %v96
    %v430 = vunpack.c.h.b16 %v96
    %v431 = vunpack.c.l.b16 %v97
    %v432 = vunpack.c.h.b16 %v97
    %v433 = vunpack.c.l.b16 %v98
    %v434 = vunpack.c.h.b16 %v98
    %v435 = vunpack.c.l.b16 %v99
    %v436 = vunpack.c.h.b16 %v99
    %v437 = vunpack.c.l.b16 %v100
    %v438 = vunpack.c.h.b16 %v100
    %v439 = vunpack.c.l.b16 %v101
    %v440 = vunpack.c.h.b16 %v101
    %v441 = vunpack.c.l.b16 %v102
    %v442 = vunpack.c.h.b16 %v102
    %v443 = vunpack.c.l.b16 %v103
    %v444 = vunpack.c.h.b16 %v103
    %v445 = vunpack.c.l.b16 %v104
    %v446 = vunpack.c.h.b16 %v104
    %v447 = vunpack.c.l.b16 %v105
    %v448 = vunpack.c.h.b16 %v105
    %v449 = vunpack.c.l.b16 %v106
    %v450 = vunpack.c.h.b16 %v106
    %v451 = vunpack.c.l.b16 %v107
    %v452 = vunpack.c.h.b16 %v107
    %v453 = vunpack.c.l.b16 %v108
    %v454 = vunpack.c.h.b16 %v108
    %v455 = vunpack.c.l.b16 %v109
    %v456 = vunpack.c.h.b16 %v109
    %v457 = vunpack.c.l.b16 %v110
    %v458 = vunpack.c.h.b16 %v110
    %v459 = vunpack.c.l.b16 %v111
    %v460 = vunpack.c.h.b16 %v111
    %v461 = vunpack.c.l.b16 %v112
    %v462 = vunpack.c.h.b16 %v112
    %v463 = vunpack.c.l.b16 %v113
    %v464 = vunpack.c.h.b16 %v113
    %v465 = vunpack.c.l.b16 %v114
    %v466 = vunpack.c.h.b16 %v114
    %v467 = vunpack.c.l.b16 %v115
    %v468 = vunpack.c.h.b16 %v115
    %v469 = vunpack.c.l.b16 %v116
    %v470 = vunpack.c.h.b16 %v116
    %v471 = vunpack.c.l.b16 %v117
    %v472 = vunpack.c.h.b16 %v117
    %v473 = vunpack.c.l.b16 %v118
    %v474 = vunpack.c.h.b16 %v118
    %v475 = vunpack.c.l.b16 %v119
    %v476 = vunpack.c.h.b16 %v119
    %v477 = vunpack.c.l.b16 %v120
    %v478 = vunpack.c.h.b16 %v120
    %v479 = vunpack.c.l.b16 %v121
    %v480 = vunpack.c.h.b16 %v121
    %v481 = vunpack.c.l.b16 %v122
    %v482 = vunpack.c.h.b16 %v122
    %v483 = vunpack.c.l.b16 %v123
    %v484 = vunpack.c.h.b16 %v123
    %v485 = vunpack.c.l.b16 %v124
    %v486 = vunpack.c.h.b16 %v124
    %v487 = vunpack.c.l.b16 %v125
    %v488 = vunpack.c.h.b16 %v125
    %v489 = vunpack.c.l.b16 %v126
    %v490 = vunpack.c.h.b16 %v126
    %v491 = vunpack.c.l.b16 %v127
    %v492 = vunpack.c.h.b16 %v127
    %v493 = vunpack.c.l.b16 %v128
    %v494 = vunpack.c.h.b16 %v128
    %v495 = vunpack.c.l.b16 %v129
    %v496 = vunpack.c.h.b16 %v129
    %v497 = vunpack.c.l.b16 %v130
    %v498 = vunpack.c.h.b16 %v130
    %v499 = vunpack.c.l.b16 %v131
    %v500 = vunpack.c.h.b16 %v131
    %v501 = vunpack.c.l.b16 %v132
    %v502 = vunpack.c.h.b16 %v132
    %v503 = vunpack.c.l.b16 %v133
    %v504 = vunpack.c.h.b16 %v133
    %v505 = vunpack.c.l.b16 %v134
    %v506 = vunpack.c.h.b16 %v134
    %v507 = vunpack.c.l.b16 %v135
    %v508 = vunpack.c.h.b16 %v135
    %v509 = vunpack.c.l.b16 %v136
    %v510 = vunpack.c.h.b16 %v136
    %v511 = vunpack.c.l.b16 %v137
    %v512 = vunpack.c.h.b16 %v137
    %v513 = vunpack.c.l.b16 %v138
    %v514 = vunpack.c.h.b16 %v138
    %v515 = vunpack.c.l.b16 %v139
    %v516 = vunpack.c.h.b16 %v139
    %v517 = vunpack.c.l.b16 %v140
    %v518 = vunpack.c.h.b16 %v140
    %v519 = vunpack.c.l.b16 %v141
    %v520 = vunpack.c.h.b16 %v141
    %v521 = vunpack.c.l.b16 %v142
    %v522 = vunpack.c.h.b16 %v142
    %v523 = vunpack.c.l.b16 %v143
    %v524 = vunpack.c.h.b16 %v143
    %v525 = vunpack.c.l.b16 %v144
    %v526 = vunpack.c.h.b16 %v144
    %v527 = vunpack.c.l.b16 %v145
    %v528 = vunpack.c.h.b16 %v145
    %v529 = vunpack.c.l.b16 %v146
    %v530 = vunpack.c.h.b16 %v146
    %v531 = vunpack.c.l.b16 %v147
    %v532 = vunpack.c.h.b16 %v147
    %v533 = vunpack.c.l.b16 %v148
    %v534 = vunpack.c.h.b16 %v148
    %v535 = vunpack.c.l.b16 %v149
    %v536 = vunpack.c.h.b16 %v149
    %v537 = vunpack.c.l.b16 %v150
    %v538 = vunpack.c.h.b16 %v150
    %v539 = vunpack.c.l.b16 %v151
    %v540 = vunpack.c.h.b16 %v151
    %v541 = vunpack.c.l.b16 %v152
    %v542 = vunpack.c.h.b16 %v152
    %v543 = vunpack.c.l.b16 %v153
    %v544 = vunpack.c.h.b16 %v153
    %v545 = vunpack.c.l.b16 %v154
    %v546 = vunpack.c.h.b16 %v154
    %v547 = vunpack.c.l.b16 %v155
    %v548 = vunpack.c.h.b16 %v155
    %v549 = vunpack.c.l.b16 %v156
    %v550 = vunpack.c.h.b16 %v156
    %v551 = vunpack.c.l.b16 %v157
    %v552 = vunpack.c.h.b16 %v157
    %v553 = vunpack.c.l.b16 %v158
    %v554 = vunpack.c.h.b16 %v158
    %v555 = vunpack.c.l.b16 %v159
    %v556 = vunpack.c.h.b16 %v159
    %v557 = vunpack.c.l.b16 %v160
    %v558 = vunpack.c.h.b16 %v160
    %v559 = vunpack.c.l.b16 %v161
    %v560 = vunpack.c.h.b16 %v161
    %v561 = vunpack.c.l.b16 %v162
    %v562 = vunpack.c.h.b16 %v162
    %v563 = vunpack.c.l.b16 %v163
    %v564 = vunpack.c.h.b16 %v163
    %v565 = vunpack.c.l.b16 %v164
    %v566 = vunpack.c.h.b16 %v164
    %v567 = vunpack.c.l.b16 %v165
    %v568 = vunpack.c.h.b16 %v165
    %v569 = vunpack.c.l.b16 %v166
    %v570 = vunpack.c.h.b16 %v166
    %v571 = vunpack.c.l.b16 %v167
    %v572 = vunpack.c.h.b16 %v167
    %v573 = vunpack.c.l.b16 %v168
    %v574 = vunpack.c.h.b16 %v168
    %v575 = vunpack.c.l.b16 %v169
    %v576 = vunpack.c.h.b16 %v169
    %v577 = vunpack.c.l.b16 %v170
    %v578 = vunpack.c.h.b16 %v170
    %v579 = vunpack.c.l.b16 %v171
    %v580 = vunpack.c.h.b16 %v171
    %v581 = vunpack.c.l.b16 %v172
    %v582 = vunpack.c.h.b16 %v172
    %v583 = vunpack.c.l.b16 %v173
    %v584 = vunpack.c.h.b16 %v173
    %v585 = vunpack.c.l.b16 %v174
    %v586 = vunpack.c.h.b16 %v174
    %v587 = vunpack.c.l.b16 %v175
    %v588 = vunpack.c.h.b16 %v175
    %v589 = vunpack.c.l.b16 %v176
    %v590 = vunpack.c.h.b16 %v176
    %v591 = vunpack.c.l.b16 %v177
    %v592 = vunpack.c.h.b16 %v177
    %v593 = vunpack.c.l.b16 %v178
    %v594 = vunpack.c.h.b16 %v178
    %v595 = vunpack.c.l.b16 %v179
    %v596 = vunpack.c.h.b16 %v179
    %v597 = vunpack.c.l.b16 %v180
    %v598 = vunpack.c.h.b16 %v180
    %v599 = vunpack.c.l.b16 %v181
    %v600 = vunpack.c.h.b16 %v181
    %v601 = vunpack.c.l.b16 %v182
    %v602 = vunpack.c.h.b16 %v182
    %v603 = vunpack.c.l.b16 %v183
    %v604 = vunpack.c.h.b16 %v183
    %v605 = vunpack.c.l.b16 %v184
    %v606 = vunpack.c.h.b16 %v184
    %v607 = vunpack.c.l.b16 %v185
    %v608 = vunpack.c.h.b16 %v185
    %v609 = vunpack.c.l.b16 %v186
    %v610 = vunpack.c.h.b16 %v186
    %v611 = vunpack.c.l.b16 %v187
    %v612 = vunpack.c.h.b16 %v187
    %v613 = vunpack.c.l.b16 %v188
    %v614 = vunpack.c.h.b16 %v188
    %v615 = vunpack.c.l.b16 %v189
    %v616 = vunpack.c.h.b16 %v189
    %v617 = vunpack.c.l.b16 %v190
    %v618 = vunpack.c.h.b16 %v190
    %v619 = vunpack.c.l.b16 %v191
    %v620 = vunpack.c.h.b16 %v191
    %v621 = vunpack.c.l.b16 %v192
    %v622 = vunpack.c.h.b16 %v192
    %v623 = vunpack.c.l.b16 %v193
    %v624 = vunpack.c.h.b16 %v193
    %v625 = vunpack.c.l.b16 %v194
    %v626 = vunpack.c.h.b16 %v194
    %v627 = vunpack.c.l.b16 %v195
    %v628 = vunpack.c.h.b16 %v195
    %v629 = vunpack.c.l.b16 %v196
    %v630 = vunpack.c.h.b16 %v196
    %v631 = vunpack.c.l.b16 %v197
    %v632 = vunpack.c.h.b16 %v197
    %v633 = vunpack.c.l.b16 %v198
    %v634 = vunpack.c.h.b16 %v198
    %v635 = vunpack.c.l.b16 %v199
    %v636 = vunpack.c.h.b16 %v199
    %v637 = vunpack.c.l.b16 %v200
    %v638 = vunpack.c.h.b16 %v200
    %v639 = vunpack.c.l.b16 %v201
    %v640 = vunpack.c.h.b16 %v201
    %v641 = vunpack.c.l.b16 %v202
    %v642 = vunpack.c.h.b16 %v202
    %v643 = vunpack.c.l.b16 %v203
    %v644 = vunpack.c.h.b16 %v203
    %v645 = vunpack.c.l.b16 %v204
    %v646 = vunpack.c.h.b16 %v204
    %v647 = vunpack.c.l.b16 %v205
    %v648 = vunpack.c.h.b16 %v205
    %v649 = vunpack.c.l.b16 %v206
    %v650 = vunpack.c.h.b16 %v206
    %v651 = vunpack.c.l.b16 %v207
    %v652 = vunpack.c.h.b16 %v207
    %v653 = vunpack.c.l.b16 %v208
    %v654 = vunpack.c.h.b16 %v208
    %v655 = vunpack.c.l.b16 %v209
    %v656 = vunpack.c.h.b16 %v209
    %v657 = vunpack.c.l.b16 %v210
    %v658 = vunpack.c.h.b16 %v210
    %v659 = vunpack.c.l.b16 %v211
    %v660 = vunpack.c.h.b16 %v211
    %v661 = vunpack.c.l.b16 %v212
    %v662 = vunpack.c.h.b16 %v212
    %v663 = vunpack.c.l.b16 %v213
    %v664 = vunpack.c.h.b16 %v213
    %v665 = vunpack.c.l.b16 %v214
    %v666 = vunpack.c.h.b16 %v214
    %v667 = vunpack.c.l.b16 %v215
    %v668 = vunpack.c.h.b16 %v215
    %v669 = vunpack.c.l.b16 %v216
    %v670 = vunpack.c.h.b16 %v216
    %v671 = vunpack.c.l.b16 %v217
    %v672 = vunpack.c.h.b16 %v217
    %v673 = vunpack.c.l.b16 %v218
    %v674 = vunpack.c.h.b16 %v218
    %v675 = vunpack.c.l.b16 %v219
    %v676 = vunpack.c.h.b16 %v219
    %v677 = vunpack.c.l.b16 %v220
    %v678 = vunpack.c.h.b16 %v220
    %v679 = vunpack.c.l.b16 %v221
    %v680 = vunpack.c.h.b16 %v221
    %v681 = vunpack.c.l.b16 %v222
    %v682 = vunpack.c.h.b16 %v222
    %v683 = vunpack.c.l.b16 %v223
    %v684 = vunpack.c.h.b16 %v223
    %v685 = vunpack.c.l.b16 %v224
    %v686 = vunpack.c.h.b16 %v224
    %v687 = vunpack.c.l.b16 %v225
    %v688 = vunpack.c.h.b16 %v225
    %v689 = vunpack.c.l.b16 %v226
    %v690 = vunpack.c.h.b16 %v226
    %v691 = vunpack.c.l.b16 %v227
    %v692 = vunpack.c.h.b16 %v227
    %v693 = vunpack.c.l.b16 %v228
    %v694 = vunpack.c.h.b16 %v228
    %v695 = vunpack.c.l.b16 %v229
    %v696 = vunpack.c.h.b16 %v229
    %v697 = vunpack.c.l.b16 %v230
    %v698 = vunpack.c.h.b16 %v230
    %v699 = vunpack.c.l.b16 %v231
    %v700 = vunpack.c.h.b16 %v231
    %v701 = vunpack.c.l.b16 %v232
    %v702 = vunpack.c.h.b16 %v232
    %v703 = vunpack.c.l.b16 %v233
    %v704 = vunpack.c.h.b16 %v233
    %v705 = vunpack.c.l.b16 %v234
    %v706 = vunpack.c.h.b16 %v234
    %v707 = vunpack.c.l.b16 %v235
    %v708 = vunpack.c.h.b16 %v235
    %v709 = vunpack.c.l.b16 %v236
    %v710 = vunpack.c.h.b16 %v236
    %v711 = vunpack.c.l.b16 %v237
    %v712 = vunpack.c.h.b16 %v237
    %v713 = vunpack.c.l.b16 %v238
    %v714 = vunpack.c.h.b16 %v238
    %v715 = vunpack.c.l.b16 %v239
    %v716 = vunpack.c.h.b16 %v239
    %v717 = vunpack.c.l.b16 %v240
    %v718 = vunpack.c.h.b16 %v240
    %v719 = vunpack.c.l.b16 %v241
    %v720 = vunpack.c.h.b16 %v241
    %v721 = vunpack.c.l.b16 %v242
    %v722 = vunpack.c.h.b16 %v242
    %v723 = vpack.c.b16 %v405, %v403
    %v724 = vpack.c.b16 %v406, %v404
    %v725 = vpack.c.b16 %v409, %v407
    %v726 = vpack.c.b16 %v410, %v408
    %v727 = vpack.c.b16 %v413, %v411
    %v728 = vpack.c.b16 %v414, %v412
    %v729 = vpack.c.b16 %v417, %v415
    %v730 = vpack.c.b16 %v418, %v416
    %v731 = vpack.c.b16 %v421, %v419
    %v732 = vpack.c.b16 %v422, %v420
    %v733 = vpack.c.b16 %v425, %v423
    %v734 = vpack.c.b16 %v426, %v424
    %v735 = vpack.c.b16 %v429, %v427
    %v736 = vpack.c.b16 %v430, %v428
    %v737 = vpack.c.b16 %v433, %v431
    %v738 = vpack.c.b16 %v434, %v432
    %v739 = vpack.c.b16 %v437, %v435
    %v740 = vpack.c.b16 %v438, %v436
    %v741 = vpack.c.b16 %v441, %v439
    %v742 = vpack.c.b16 %v442, %v440
    %v743 = vpack.c.b16 %v445, %v443
    %v744 = vpack.c.b16 %v446, %v444
    %v745 = vpack.c.b16 %v449, %v447
    %v746 = vpack.c.b16 %v450, %v448
    %v747 = vpack.c.b16 %v453, %v451
    %v748 = vpack.c.b16 %v454, %v452
    %v749 = vpack.c.b16 %v457, %v455
    %v750 = vpack.c.b16 %v458, %v456
    %v751 = vpack.c.b16 %v461, %v459
    %v752 = vpack.c.b16 %v462, %v460
    %v753 = vpack.c.b16 %v465, %v463
    %v754 = vpack.c.b16 %v466, %v464
    %v755 = vpack.c.b16 %v469, %v467
    %v756 = vpack.c.b16 %v470, %v468
    %v757 = vpack.c.b16 %v473, %v471
    %v758 = vpack.c.b16 %v474, %v472
    %v759 = vpack.c.b16 %v477, %v475
    %v760 = vpack.c.b16 %v478, %v476
    %v761 = vpack.c.b16 %v481, %v479
    %v762 = vpack.c.b16 %v482, %v480
    %v763 = vpack.c.b16 %v485, %v483
    %v764 = vpack.c.b16 %v486, %v484
    %v765 = vpack.c.b16 %v489, %v487
    %v766 = vpack.c.b16 %v490, %v488
    %v767 = vpack.c.b16 %v493, %v491
    %v768 = vpack.c.b16 %v494, %v492
    %v769 = vpack.c.b16 %v497, %v495
    %v770 = vpack.c.b16 %v498, %v496
    %v771 = vpack.c.b16 %v501, %v499
    %v772 = vpack.c.b16 %v502, %v500
    %v773 = vpack.c.b16 %v505, %v503
    %v774 = vpack.c.b16 %v506, %v504
    %v775 = vpack.c.b16 %v509, %v507
    %v776 = vpack.c.b16 %v510, %v508
    %v777 = vpack.c.b16 %v513, %v511
    %v778 = vpack.c.b16 %v514, %v512
    %v779 = vpack.c.b16 %v517, %v515
    %v780 = vpack.c.b16 %v518, %v516
    %v781 = vpack.c.b16 %v521, %v519
    %v782 = vpack.c.b16 %v522, %v520
    %v783 = vpack.c.b16 %v525, %v523
    %v784 = vpack.c.b16 %v526, %v524
    %v785 = vpack.c.b16 %v529, %v527
    %v786 = vpack.c.b16 %v530, %v528
    %v787 = vpack.c.b16 %v533, %v531
    %v788 = vpack.c.b16 %v534, %v532
    %v789 = vpack.c.b16 %v537, %v535
    %v790 = vpack.c.b16 %v538, %v536
    %v791 = vpack.c.b16 %v541, %v539
    %v792 = vpack.c.b16 %v542, %v540
    %v793 = vpack.c.b16 %v545, %v543
    %v794 = vpack.c.b16 %v546, %v544
    %v795 = vpack.c.b16 %v549, %v547
    %v796 = vpack.c.b16 %v550, %v548
    %v797 = vpack.c.b16 %v553, %v551
    %v798 = vpack.c.b16 %v554, %v552
    %v799 = vpack.c.b16 %v557, %v555
    %v800 = vpack.c.b16 %v558, %v556
    %v801 = vpack.c.b16 %v561, %v559
    %v802 = vpack.c.b16 %v562, %v560
    %v803 = vpack.c.b16 %v565, %v563
    %v804 = vpack.c.b16 %v566, %v564
    %v805 = vpack.c.b16 %v569, %v567
    %v806 = vpack.c.b16 %v570, %v568
    %v807 = vpack.c.b16 %v573, %v571
    %v808 = vpack.c.b16 %v574, %v572
    %v809 = vpack.c.b16 %v577, %v575
    %v810 = vpack.c.b16 %v578, %v576
    %v811 = vpack.c.b16 %v581, %v579
    %v812 = vpack.c.b16 %v582, %v580
    %v813 = vpack.c.b16 %v585, %v583
    %v814 = vpack.c.b16 %v586, %v584
    %v815 = vpack.c.b16 %v589, %v587
    %v816 = vpack.c.b16 %v590, %v588
    %v817 = vpack.c.b16 %v593, %v591
    %v818 = vpack.c.b16 %v594, %v592
    %v819 = vpack.c.b16 %v597, %v595
    %v820 = vpack.c.b16 %v598, %v596
    %v821 = vpack.c.b16 %v601, %v599
    %v822 = vpack.c.b16 %v602, %v600
    %v823 = vpack.c.b16 %v605, %v603
    %v824 = vpack.c.b16 %v606, %v604
    %v825 = vpack.c.b16 %v609, %v607
    %v826 = vpack.c.b16 %v610, %v608
    %v827 = vpack.c.b16 %v613, %v611
    %v828 = vpack.c.b16 %v614, %v612
    %v829 = vpack.c.b16 %v617, %v615
    %v830 = vpack.c.b16 %v618, %v616
    %v831 = vpack.c.b16 %v621, %v619
    %v832 = vpack.c.b16 %v622, %v620
    %v833 = vpack.c.b16 %v625, %v623
    %v834 = vpack.c.b16 %v626, %v624
    %v835 = vpack.c.b16 %v629, %v627
    %v836 = vpack.c.b16 %v630, %v628
    %v837 = vpack.c.b16 %v633, %v631
    %v838 = vpack.c.b16 %v634, %v632
    %v839 = vpack.c.b16 %v637, %v635
    %v840 = vpack.c.b16 %v638, %v636
    %v841 = vpack.c.b16 %v641, %v639
    %v842 = vpack.c.b16 %v642, %v640
    %v843 = vpack.c.b16 %v645, %v643
    %v844 = vpack.c.b16 %v646, %v644
    %v845 = vpack.c.b16 %v649, %v647
    %v846 = vpack.c.b16 %v650, %v648
    %v847 = vpack.c.b16 %v653, %v651
    %v848 = vpack.c.b16 %v654, %v652
    %v849 = vpack.c.b16 %v657, %v655
    %v850 = vpack.c.b16 %v658, %v656
    %v851 = vpack.c.b16 %v661, %v659
    %v852 = vpack.c.b16 %v662, %v660
    %v853 = vpack.c.b16 %v665, %v663
    %v854 = vpack.c.b16 %v666, %v664
    %v855 = vpack.c.b16 %v669, %v667
    %v856 = vpack.c.b16 %v670, %v668
    %v857 = vpack.c.b16 %v673, %v671
    %v858 = vpack.c.b16 %v674, %v672
    %v859 = vpack.c.b16 %v677, %v675
    %v860 = vpack.c.b16 %v678, %v676
    %v861 = vpack.c.b16 %v681, %v679
    %v862 = vpack.c.b16 %v682, %v680
    %v863 = vpack.c.b16 %v685, %v683
    %v864 = vpack.c.b16 %v686, %v684
    %v865 = vpack.c.b16 %v689, %v687
    %v866 = vpack.c.b16 %v690, %v688
    %v867 = vpack.c.b16 %v693, %v691
    %v868 = vpack.c.b16 %v694, %v692
    %v869 = vpack.c.b16 %v697, %v695
    %v870 = vpack.c.b16 %v698, %v696
    %v871 = vpack.c.b16 %v701, %v699
    %v872 = vpack.c.b16 %v702, %v700
    %v873 = vpack.c.b16 %v705, %v703
    %v874 = vpack.c.b16 %v706, %v704
    %v875 = vpack.c.b16 %v709, %v707
    %v876 = vpack.c.b16 %v710, %v708
    %v877 = vpack.c.b16 %v713, %v711
    %v878 = vpack.c.b16 %v714, %v712
    %v879 = vpack.c.b16 %v717, %v715
    %v880 = vpack.c.b16 %v718, %v716
    %v881 = vpack.c.b16 %v721, %v719
    %v882 = vpack.c.b16 %v722, %v720
    %1043 = vmatprep.subr.bf16.mxu0 %v738
    %1044 = vmatpush1.bf16.msra.mxu0 %v737
    %1045 = vmatprep.subr.bf16.mxu0 %v736
    %1046 = vmatpush1.bf16.msra.mxu0 %v735
    %1047 = vmatprep.subr.bf16.mxu0 %v734
    %1048 = vmatpush1.bf16.msra.mxu0 %v733
    %1049 = vmatprep.subr.bf16.mxu0 %v732
    %1050 = vmatpush1.bf16.msra.mxu0 %v731
    %1051 = vmatprep.subr.bf16.mxu0 %v730
    %1052 = vmatpush1.bf16.msra.mxu0 %v729
    %1053 = vmatprep.subr.bf16.mxu0 %v728
    %1054 = vmatpush1.bf16.msra.mxu0 %v727
    %1055 = vmatprep.subr.bf16.mxu0 %v726
    %1056 = vmatpush1.bf16.msra.mxu0 %v725
    %1057 = vmatprep.subr.bf16.mxu0 %v724
    %1058 = vmatpush1.bf16.msra.mxu0 %v723
    %1059 = vmatprep.subr.bf16.mxu0 %v754
    %1060 = vmatpush2.bf16.msra.mxu0 %v753
    %1061 = vmatprep.subr.bf16.mxu0 %v752
    %1062 = vmatpush2.bf16.msra.mxu0 %v751
    %1063 = vmatprep.subr.bf16.mxu0 %v750
    %1064 = vmatpush2.bf16.msra.mxu0 %v749
    %1065 = vmatprep.subr.bf16.mxu0 %v748
    %1066 = vmatpush2.bf16.msra.mxu0 %v747
    %1067 = vmatprep.subr.bf16.mxu0 %v746
    %1068 = vmatpush2.bf16.msra.mxu0 %v745
    %1069 = vmatprep.subr.bf16.mxu0 %v744
    %1070 = vmatpush2.bf16.msra.mxu0 %v743
    %1071 = vmatprep.subr.bf16.mxu0 %v742
    %1072 = vmatpush2.bf16.msra.mxu0 %v741
    %1073 = vmatprep.subr.bf16.mxu0 %v740
    %1074 = vmatpush2.bf16.msra.mxu0 %v739
    %1075 = vmatprep.mubr.bf16.mxu0 %v74
    %1076 = vmatmul.mubr.bf16.gmra.mxu0 %v73
    %v1077 = vpop.f32.mrf.mxu0
    %v1078 = vadd.f32 0.0, %v1077
    %v1079 = vpop.f32.mrf.mxu0
    %v1080 = vadd.f32 0.0, %v1079
    %v1081 = vpop.f32.mrf.mxu0
    %v1082 = vpop.f32.mrf.mxu0
    %1083 = vdwg.mxu0
    %1084 = vmatprep.subr.bf16.mxu0 %v770
    %1085 = vmatpush1.bf16.msra.mxu0 %v769
    %1086 = vmatprep.subr.bf16.mxu0 %v768
    %1087 = vmatpush1.bf16.msra.mxu0 %v767
    %1088 = vmatprep.subr.bf16.mxu0 %v766
    %1089 = vmatpush1.bf16.msra.mxu0 %v765
    %1090 = vmatprep.subr.bf16.mxu0 %v764
    %1091 = vmatpush1.bf16.msra.mxu0 %v763
    %1092 = vmatprep.subr.bf16.mxu0 %v762
    %1093 = vmatpush1.bf16.msra.mxu0 %v761
    %1094 = vmatprep.subr.bf16.mxu0 %v760
    %1095 = vmatpush1.bf16.msra.mxu0 %v759
    %1096 = vmatprep.subr.bf16.mxu0 %v758
    %1097 = vmatpush1.bf16.msra.mxu0 %v757
    %1098 = vmatprep.subr.bf16.mxu0 %v756
    %1099 = vmatpush1.bf16.msra.mxu0 %v755
    %1100 = vmatprep.subr.bf16.mxu0 %v786
    %1101 = vmatpush2.bf16.msra.mxu0 %v785
    %1102 = vmatprep.subr.bf16.mxu0 %v784
    %1103 = vmatpush2.bf16.msra.mxu0 %v783
    %1104 = vmatprep.subr.bf16.mxu0 %v782
    %1105 = vmatpush2.bf16.msra.mxu0 %v781
    %1106 = vmatprep.subr.bf16.mxu0 %v780
    %1107 = vmatpush2.bf16.msra.mxu0 %v779
    %1108 = vmatprep.subr.bf16.mxu0 %v778
    %1109 = vmatpush2.bf16.msra.mxu0 %v777
    %1110 = vmatprep.subr.bf16.mxu0 %v776
    %1111 = vmatpush2.bf16.msra.mxu0 %v775
    %1112 = vmatprep.subr.bf16.mxu0 %v774
    %1113 = vmatpush2.bf16.msra.mxu0 %v773
    %1114 = vmatprep.subr.bf16.mxu0 %v772
    %1115 = vmatpush2.bf16.msra.mxu0 %v771
    %1116 = vmatprep.mubr.bf16.mxu0 %v76
    %1117 = vmatmul.mubr.bf16.gmra.mxu0 %v75
    %v1118 = vpop.f32.mrf.mxu0
    %v1119 = vadd.f32 %v1078, %v1118
    %v1120 = vpop.f32.mrf.mxu0
    %v1121 = vadd.f32 %v1080, %v1120
    %v1122 = vpop.f32.mrf.mxu0
    %v1123 = vpop.f32.mrf.mxu0
    %1124 = vdwg.mxu0
    %1125 = vmatprep.subr.bf16.mxu0 %v802
    %1126 = vmatpush1.bf16.msra.mxu0 %v801
    %1127 = vmatprep.subr.bf16.mxu0 %v800
    %1128 = vmatpush1.bf16.msra.mxu0 %v799
    %1129 = vmatprep.subr.bf16.mxu0 %v798
    %1130 = vmatpush1.bf16.msra.mxu0 %v797
    %1131 = vmatprep.subr.bf16.mxu0 %v796
    %1132 = vmatpush1.bf16.msra.mxu0 %v795
    %1133 = vmatprep.subr.bf16.mxu0 %v794
    %1134 = vmatpush1.bf16.msra.mxu0 %v793
    %1135 = vmatprep.subr.bf16.mxu0 %v792
    %1136 = vmatpush1.bf16.msra.mxu0 %v791
    %1137 = vmatprep.subr.bf16.mxu0 %v790
    %1138 = vmatpush1.bf16.msra.mxu0 %v789
    %1139 = vmatprep.subr.bf16.mxu0 %v788
    %1140 = vmatpush1.bf16.msra.mxu0 %v787
    %1141 = vmatprep.subr.bf16.mxu0 %v818
    %1142 = vmatpush2.bf16.msra.mxu0 %v817
    %1143 = vmatprep.subr.bf16.mxu0 %v816
    %1144 = vmatpush2.bf16.msra.mxu0 %v815
    %1145 = vmatprep.subr.bf16.mxu0 %v814
    %1146 = vmatpush2.bf16.msra.mxu0 %v813
    %1147 = vmatprep.subr.bf16.mxu0 %v812
    %1148 = vmatpush2.bf16.msra.mxu0 %v811
    %1149 = vmatprep.subr.bf16.mxu0 %v810
    %1150 = vmatpush2.bf16.msra.mxu0 %v809
    %1151 = vmatprep.subr.bf16.mxu0 %v808
    %1152 = vmatpush2.bf16.msra.mxu0 %v807
    %1153 = vmatprep.subr.bf16.mxu0 %v806
    %1154 = vmatpush2.bf16.msra.mxu0 %v805
    %1155 = vmatprep.subr.bf16.mxu0 %v804
    %1156 = vmatpush2.bf16.msra.mxu0 %v803
    %1157 = vmatprep.mubr.bf16.mxu0 %v78
    %1158 = vmatmul.mubr.bf16.gmra.mxu0 %v77
    %v1159 = vpop.f32.mrf.mxu0
    %v1160 = vadd.f32 %v1119, %v1159
    %v1161 = vpop.f32.mrf.mxu0
    %v1162 = vadd.f32 %v1121, %v1161
    %v1163 = vpop.f32.mrf.mxu0
    %v1164 = vpop.f32.mrf.mxu0
    %1165 = vdwg.mxu0
    %1166 = vmatprep.subr.bf16.mxu0 %v834
    %1167 = vmatpush1.bf16.msra.mxu0 %v833
    %1168 = vmatprep.subr.bf16.mxu0 %v832
    %1169 = vmatpush1.bf16.msra.mxu0 %v831
    %1170 = vmatprep.subr.bf16.mxu0 %v830
    %1171 = vmatpush1.bf16.msra.mxu0 %v829
    %1172 = vmatprep.subr.bf16.mxu0 %v828
    %1173 = vmatpush1.bf16.msra.mxu0 %v827
    %1174 = vmatprep.subr.bf16.mxu0 %v826
    %1175 = vmatpush1.bf16.msra.mxu0 %v825
    %1176 = vmatprep.subr.bf16.mxu0 %v824
    %1177 = vmatpush1.bf16.msra.mxu0 %v823
    %1178 = vmatprep.subr.bf16.mxu0 %v822
    %1179 = vmatpush1.bf16.msra.mxu0 %v821
    %1180 = vmatprep.subr.bf16.mxu0 %v820
    %1181 = vmatpush1.bf16.msra.mxu0 %v819
    %1182 = vmatprep.subr.bf16.mxu0 %v850
    %1183 = vmatpush2.bf16.msra.mxu0 %v849
    %1184 = vmatprep.subr.bf16.mxu0 %v848
    %1185 = vmatpush2.bf16.msra.mxu0 %v847
    %1186 = vmatprep.subr.bf16.mxu0 %v846
    %1187 = vmatpush2.bf16.msra.mxu0 %v845
    %1188 = vmatprep.subr.bf16.mxu0 %v844
    %1189 = vmatpush2.bf16.msra.mxu0 %v843
    %1190 = vmatprep.subr.bf16.mxu0 %v842
    %1191 = vmatpush2.bf16.msra.mxu0 %v841
    %1192 = vmatprep.subr.bf16.mxu0 %v840
    %1193 = vmatpush2.bf16.msra.mxu0 %v839
    %1194 = vmatprep.subr.bf16.mxu0 %v838
    %1195 = vmatpush2.bf16.msra.mxu0 %v837
    %1196 = vmatprep.subr.bf16.mxu0 %v836
    %1197 = vmatpush2.bf16.msra.mxu0 %v835
    %1198 = vmatprep.mubr.bf16.mxu0 %v80
    %1199 = vmatmul.mubr.bf16.gmra.mxu0 %v79
    %v1200 = vpop.f32.mrf.mxu0
    %v1201 = vadd.f32 %v1160, %v1200
    %v1202 = vpop.f32.mrf.mxu0
    %v1203 = vadd.f32 %v1162, %v1202
    %v1204 = vpop.f32.mrf.mxu0
    %v1205 = vpop.f32.mrf.mxu0
    %1206 = vdwg.mxu0
    %1207 = vmatprep.subr.bf16.mxu0 %v866
    %1208 = vmatpush1.bf16.msra.mxu0 %v865
    %1209 = vmatprep.subr.bf16.mxu0 %v864
    %1210 = vmatpush1.bf16.msra.mxu0 %v863
    %1211 = vmatprep.subr.bf16.mxu0 %v862
    %1212 = vmatpush1.bf16.msra.mxu0 %v861
    %1213 = vmatprep.subr.bf16.mxu0 %v860
    %1214 = vmatpush1.bf16.msra.mxu0 %v859
    %1215 = vmatprep.subr.bf16.mxu0 %v858
    %1216 = vmatpush1.bf16.msra.mxu0 %v857
    %1217 = vmatprep.subr.bf16.mxu0 %v856
    %1218 = vmatpush1.bf16.msra.mxu0 %v855
    %1219 = vmatprep.subr.bf16.mxu0 %v854
    %1220 = vmatpush1.bf16.msra.mxu0 %v853
    %1221 = vmatprep.subr.bf16.mxu0 %v852
    %1222 = vmatpush1.bf16.msra.mxu0 %v851
    %1223 = vmatprep.subr.bf16.mxu0 %v882
    %1224 = vmatpush2.bf16.msra.mxu0 %v881
    %1225 = vmatprep.subr.bf16.mxu0 %v880
    %1226 = vmatpush2.bf16.msra.mxu0 %v879
    %1227 = vmatprep.subr.bf16.mxu0 %v878
    %1228 = vmatpush2.bf16.msra.mxu0 %v877
    %1229 = vmatprep.subr.bf16.mxu0 %v876
    %1230 = vmatpush2.bf16.msra.mxu0 %v875
    %1231 = vmatprep.subr.bf16.mxu0 %v874
    %1232 = vmatpush2.bf16.msra.mxu0 %v873
    %1233 = vmatprep.subr.bf16.mxu0 %v872
    %1234 = vmatpush2.bf16.msra.mxu0 %v871
    %1235 = vmatprep.subr.bf16.mxu0 %v870
    %1236 = vmatpush2.bf16.msra.mxu0 %v869
    %1237 = vmatprep.subr.bf16.mxu0 %v868
    %1238 = vmatpush2.bf16.msra.mxu0 %v867
    %1239 = vmatprep.mubr.bf16.mxu0 %v82
    %1240 = vmatmul.mubr.bf16.gmra.mxu0 %v81
    %v1241 = vpop.f32.mrf.mxu0
    %v1242 = vadd.f32 %v1201, %v1241
    %v1243 = vpop.f32.mrf.mxu0
    %v1244 = vadd.f32 %v1203, %v1243
    %v1245 = vpop.f32.mrf.mxu0
    %v1246 = vpop.f32.mrf.mxu0
    %1247 = vdwg.mxu0
    %vm1248 = vcmask 1041408
    %v1249 = vsel %vm1248, %v1242, 0.0
    %v1250 = vrot.slane %v1249, 4
    %v1251 = vadd.f32 %v1249, %v1250
    %v1252 = vrot.slane %v1251, 2
    %v1253 = vadd.f32 %v1251, %v1252
    %v1254 = vrot.slane %v1253, 1
    %v1255 = vadd.f32 %v1253, %v1254
    %vm1256 = vcmask 17408
    %v1257 = vsel %vm1256, %v1244, 0.0
    %v1258 = vrot.slane %v1257, 4
    %v1259 = vadd.f32 %v1257, %v1258
    %v1260 = vrot.slane %v1259, 2
    %v1261 = vadd.f32 %v1259, %v1260
    %v1262 = vrot.slane %v1261, 1
    %v1263 = vadd.f32 %v1261, %v1262
    %v1264 = vrcp.pop 2.0
    %v1265 = vmul.f32 %v1255, %v1264
    %v1266 = vmul.f32 %v1263, %v1264
    %v1267 = vsub.f32 %v1242, %v1265
    %v1268 = vsub.f32 %v1244, %v1266
    %v1269 = vmul.f32 %v1267, %v1267
    %v1270 = vmul.f32 %v1268, %v1268
    %v1271 = vsel %vm1248, %v1269, 0.0
    %v1272 = vrot.slane %v1271, 4
    %v1273 = vadd.f32 %v1271, %v1272
    %v1274 = vrot.slane %v1273, 2
    %v1275 = vadd.f32 %v1273, %v1274
    %v1276 = vrot.slane %v1275, 1
    %v1277 = vadd.f32 %v1275, %v1276
    %v1278 = vsel %vm1256, %v1270, 0.0
    %v1279 = vrot.slane %v1278, 4
    %v1280 = vadd.f32 %v1278, %v1279
    %v1281 = vrot.slane %v1280, 2
    %v1282 = vadd.f32 %v1280, %v1281
    %v1283 = vrot.slane %v1282, 1
    %v1284 = vadd.f32 %v1282, %v1283
    %v1285 = vmul.f32 %v1277, %v1264
    %v1286 = vmul.f32 %v1284, %v1264
    %v1287 = vld [vmem:[%s2] ss:$2 sm:$0x3]
    %s1288 = scalar_lea.vmem %s2, 1
    %v1289 = vld [vmem:[%s1288] ss:$2 sm:$0x3]
    %v1291 = vlaneseq
    %v1292 = vshrl.u32 %v1291, 7
    %v1293 = vsub.s32 0, %v1292
    %v1294 = vrot.slane %v1287, %v1293
    %v1295 = vlaneseq
    %v1296 = vshrl.u32 %v1295, 7
    %v1297 = vsub.s32 1, %v1296
    %v1298 = vrot.slane %v1287, %v1297
    %v1301 = vmul.f32 %v1294, %v1267
    %v1302 = vmul.f32 %v1298, %v1268
    %v1303 = vadd.f32 %v1285, 1e-05
    %v1304 = vadd.f32 %v1286, 1e-05
    %v1305 = vrsqrt.pop %v1303
    %v1306 = vrsqrt.pop %v1304
    %v1307 = vmul.f32 %v1301, %v1305
    %v1308 = vmul.f32 %v1302, %v1306
    %v1310 = vlaneseq
    %v1311 = vshrl.u32 %v1310, 7
    %v1312 = vsub.s32 0, %v1311
    %v1313 = vrot.slane %v1289, %v1312
    %v1314 = vlaneseq
    %v1315 = vshrl.u32 %v1314, 7
    %v1316 = vsub.s32 1, %v1315
    %v1317 = vrot.slane %v1289, %v1316
    %v1320 = vadd.f32 %v1307, %v1313
    %v1321 = vadd.f32 %v1308, %v1317
    %v1322 = vmax.f32 %v1320, 0.0
    %v1323 = vmax.f32 %v1321, 0.0
    %v1326 = vcombine.low %v1322, %v1323
    %v1328 = vunpack.c.l.s4 1983009808
    %v1329 = vunpack.c.0.s8 %v1328
    %v1330 = vlaneseq
    %v1331 = vshrl.u32 %v1330, 7
    %v1332 = vsub.s32 %v1329, %v1331
    %v1333 = vrot.slane %v1326, %v1332
    %vm1335 = vcmask 19458
    %vm1336 = vmor %vm1335, %vm1248
    %1337 = vst.msk [vmem:[#allocation2] sm:$0xf] %vm1336, %v1333
    // Predicated region
    $region14: #{gsr_ph_base.1} parent=1 // pred_check
      _
    $region15: #{gsr_ph_base.1} parent=1 // pred_check_branch
      %1339 = sbr.rel (0) target = $region17
    $region16: #{gsr_ph_base.1} parent=1 // pred_region
      %s1341 = ssub.s32 64, 64
      %1342 = vsyncadd [#allocation3], %s1341
      %s1344 = sshll.u32 [#allocation2], 4
      %s1345 = int_to_ptr.vmem [resolvable:$true] %s1344
      %1347 = dma.vmem_to_hbm [thread:$0]  %s1345, 64, %s3, [#allocation3]
    $region17: #{gsr_ph_base.1} parent=1 // pred_fallthru
      _
    // Predicated region
    $region18: #{gsr_ph_base.1} parent=1 // pred_check
      _
    $region19: #{gsr_ph_base.1} parent=1 // pred_check_branch
      %1349 = sbr.rel (0) target = $region21
    $region20: #{gsr_ph_base.1} parent=1 // pred_region
      %1350 = dma.done [#allocation3], 64
    $region21: #{gsr_ph_base.1} parent=1 // pred_fallthru
      _
    %1351 = vsyncpa [#allocation3], 1

</llo_original>
